<compile_context>
chip_gen: v5e
topology: v5e:2x2
jax: 0.10.0
libtpu: 0.0.40
codegen_flags: <defaults>
</compile_context>

<pallas_src>
import functools

import jax
import jax.numpy as jnp
import numpy as np
from jax.experimental import pallas as pl
from jax.experimental.pallas import tpu as pltpu


def _make_filter(radius: int) -> np.ndarray:
    """Replicates: filt1 = ones(1,1,ks,ks); filt1[:,:,r:2r, r:2r] = -8."""
    ks = 2 * radius + 1
    filt = np.ones((ks, ks), dtype=np.float32)
    filt[radius:2 * radius, radius:2 * radius] = -8.0
    return filt


def _boundary_kernel(logits_ref, label_ref, out_ref, *, H, W, radius, smooth):
    """One grid step == one batch block.  Writes per-image dice losses (NB, 1)."""
    r = radius
    HW = H * W
    nb = logits_ref.shape[0]

    p = logits_ref[...]                                    # (nb, HW) f32
    lab = label_ref[...]
    if lab.dtype != jnp.float32:
        # Two-step int8 -> int32 -> f32 cast keeps the lowering on standard paths.
        lab = lab.astype(jnp.int32).astype(jnp.float32)

    # Lane-position helpers (computed once; shared by all images in the block).
    flat = jax.lax.broadcasted_iota(jnp.int32, (nb, HW), 1)
    if W & (W - 1) == 0:                                   # power-of-two W: bit ops
        col = jnp.bitwise_and(flat, W - 1)
        row = jnp.right_shift(flat, W.bit_length() - 1)
    else:
        col = flat % W
        row = flat // W

    def shifted(x, off, valid):
        """y[., f] = x[., f + off] where `valid` (zero padding elsewhere)."""
        y = pltpu.roll(x, shift=(-off) % HW, axis=1)       # XLU lane rotate
        return jnp.where(valid, y, 0.0)

    # Separable box sum over the all-ones (ks x ks) part of the filter.
    rs = lab
    for d in range(1, r + 1):
        rs = rs + shifted(lab, d, col < W - d) + shifted(lab, -d, col >= d)
    box = rs
    for d in range(1, r + 1):
        box = box + shifted(rs, d * W, row < H - d) + shifted(rs, -d * W, row >= d)

    # filt[r:2r, r:2r] = -8  ==  extra weight of -9 at offsets [0..r-1]^2.
    hr = lab
    for bb in range(1, r):
        hr = hr + shifted(lab, bb, col < W - bb)
    region = hr
    for aa in range(1, r):
        region = region + shifted(hr, aa * W, row < H - aa)

    conv = box - 9.0 * region
    # lbedge = 1 - (conv == 0); exact because label & filter values are small ints.
    edge = (conv != 0.0).astype(jnp.float32)

    # BinaryDiceLoss (smooth, p=2) per image; edge^2 == edge since edge in {0,1}.
    s_num = jnp.sum(p * edge, axis=1, keepdims=True)        # (nb, 1)
    s_den = jnp.sum(p * p + edge, axis=1, keepdims=True)    # (nb, 1)
    out_ref[...] = 1.0 - (2.0 * s_num + smooth) / (s_den + smooth)


def boundary_loss(logits, label, *, radius=1, smooth=1.0, batch_block=8):
    """logits: (N, 1, H, W) float; label: (N, H, W) int/float.  Returns scalar."""
    N, C, H, W = logits.shape
    assert C == 1
    assert label.shape == (N, H, W)
    assert radius >= 1
    HW = H * W

    p = logits.reshape(N, HW).astype(jnp.float32)
    if jnp.issubdtype(label.dtype, jnp.integer) or label.dtype == jnp.bool_:
        # Segmentation labels are small-integer class maps (binary for this loss):
        # int8 stream cuts label HBM bytes 4x.  Values must fit in int8.
        lab = label.reshape(N, HW).astype(jnp.int8)
    else:
        lab = label.reshape(N, HW).astype(jnp.float32)

    # Batch-block size: whole batch in one step when small; otherwise multiples
    # of 8 so the (NB, 1) output block stays sublane-aligned under "parallel".
    if N <= batch_block:
        nb = N
    else:
        nb = max(8, (batch_block // 8) * 8)
    n_pad = pl.cdiv(N, nb) * nb
    if n_pad != N:
        # Zero-padded images contribute exactly 0 loss (num = den = smooth).
        p = jnp.pad(p, ((0, n_pad - N), (0, 0)))
        lab = jnp.pad(lab, ((0, n_pad - N), (0, 0)))

    kernel = functools.partial(
        _boundary_kernel, H=H, W=W, radius=radius, smooth=float(smooth)
    )

    # Raise the scoped-VMEM limit only when the per-step working set needs it
    # (2 double-buffered input tiles + a handful of f32 temporaries).
    # TODO(synk): for very large images add an H-tiling grid axis with a 2r halo
    # instead of relying on a bigger VMEM limit.
    est = 2 * nb * HW * (4 + lab.dtype.itemsize) + 8 * nb * HW * 4
    params = dict(dimension_semantics=("parallel",))
    if est > 12 * 1024 * 1024:
        params["vmem_limit_bytes"] = int(min(2 * est, 48 * 1024 * 1024))

    out = pl.pallas_call(
        kernel,
        out_shape=jax.ShapeDtypeStruct((n_pad, 1), jnp.float32),
        grid_spec=pltpu.PrefetchScalarGridSpec(
            num_scalar_prefetch=0,
            grid=(n_pad // nb,),
            in_specs=[
                pl.BlockSpec((nb, HW), lambda n: (n, 0)),
                pl.BlockSpec((nb, HW), lambda n: (n, 0)),
            ],
            out_specs=pl.BlockSpec((nb, 1), lambda n: (n, 0)),
        ),
        compiler_params=pltpu.CompilerParams(**params),
    )(p, lab)

    return jnp.sum(out[:N, 0])


def _reference_loss(logits, label, *, radius=1, smooth=1.0):
    """Pure-JAX reference replicating the PyTorch forward."""
    filt = _make_filter(radius)
    ks = 2 * radius + 1
    N, C, H, W = logits.shape
    lab = label.astype(jnp.float32)
    lpad = jnp.pad(lab, ((0, 0), (radius, radius), (radius, radius)))
    conv = jnp.zeros((N, H, W), jnp.float32)
    for i in range(ks):
        for j in range(ks):
            conv = conv + float(filt[i, j]) * lpad[:, i:i + H, j:j + W]
    edge = 1.0 - (conv == 0.0).astype(jnp.float32)
    p = logits.astype(jnp.float32).reshape(N, -1)
    t = edge.reshape(N, -1)
    num = 2.0 * jnp.sum(p * t, axis=1) + smooth
    den = jnp.sum(p * p + t * t, axis=1) + smooth
    return jnp.sum(1.0 - num / den)


if __name__ == "__main__":
    key = jax.random.PRNGKey(0)
    k1, k2 = jax.random.split(key)

    N, H, W = 2, 16, 16
    # Predicted edge map (values in [0, 1]), NCHW with C=1.
    logits = jax.random.uniform(k1, (N, 1, H, W), dtype=jnp.float32)
    # Binary segmentation label, (N, H, W).
    label = jax.random.bernoulli(k2, 0.4, (N, H, W)).astype(jnp.int32)

    out = jax.block_until_ready(boundary_loss(logits, label, radius=1, smooth=1.0))
    ref = jax.block_until_ready(_reference_loss(logits, label, radius=1, smooth=1.0))
    assert np.allclose(np.asarray(out), np.asarray(ref), rtol=1e-5, atol=1e-5), (
        out, ref
    )
    print("KERNEL_OK")
</pallas_src>

<mosaic_0001>
module attributes {stable_mosaic.version = 11 : i64} {
  func.func @_boundary_kernel(%arg0: i32, %arg1: memref<2x256xf32, #tpu.memory_space<vmem>>, %arg2: memref<2x256xi8, #tpu.memory_space<vmem>>, %arg3: memref<2x1xf32, #tpu.memory_space<vmem>>) attributes {dimension_semantics = [#tpu.dimension_semantics<parallel>], iteration_bounds = array<i64: 1>, scalar_prefetch = 0 : i64, scratch_operands = 0 : i64, tpu.core_type = #tpu.core_type<tc>, window_params = [{transform_indices = @transform_0, window_bounds = array<i64: 2, 256>}, {transform_indices = @transform_1, window_bounds = array<i64: 2, 256>}, {transform_indices = @transform_2, window_bounds = array<i64: 2, 1>}]} {
    %c0 = arith.constant 0 : index
    %c0_0 = arith.constant 0 : index
    %0 = vector.load %arg1[%c0, %c0_0] : memref<2x256xf32, #tpu.memory_space<vmem>>, vector<2x256xf32>
    %c0_1 = arith.constant 0 : index
    %c0_2 = arith.constant 0 : index
    %1 = vector.load %arg2[%c0_1, %c0_2] : memref<2x256xi8, #tpu.memory_space<vmem>>, vector<2x256xi8>
    %2 = arith.extsi %1 : vector<2x256xi8> to vector<2x256xi32>
    %3 = arith.sitofp %2 : vector<2x256xi32> to vector<2x256xf32>
    %4 = tpu.iota {dimensions = array<i32: 1>} : vector<2x256xi32>
    %c15_i32 = arith.constant 15 : i32
    %5 = vector.broadcast %c15_i32 : i32 to vector<2x256xi32>
    %6 = arith.andi %4, %5 : vector<2x256xi32>
    %c4_i32 = arith.constant 4 : i32
    %7 = vector.broadcast %c4_i32 : i32 to vector<2x256xi32>
    %8 = arith.shrsi %4, %7 : vector<2x256xi32>
    %c15_i32_3 = arith.constant 15 : i32
    %9 = vector.broadcast %c15_i32_3 : i32 to vector<2x256xi32>
    %10 = arith.cmpi slt, %6, %9 : vector<2x256xi32>
    %c255_i32 = arith.constant 255 : i32
    %11 = tpu.dynamic_rotate %3 by %c255_i32 dim 1 : vector<2x256xf32>, i32 -> vector<2x256xf32>
    %cst = arith.constant 0.000000e+00 : f32
    %12 = vector.broadcast %cst : f32 to vector<2x256xf32>
    %13 = arith.select %10, %11, %12 : vector<2x256xi1>, vector<2x256xf32>
    %14 = arith.addf %3, %13 : vector<2x256xf32>
    %c1_i32 = arith.constant 1 : i32
    %15 = vector.broadcast %c1_i32 : i32 to vector<2x256xi32>
    %16 = arith.cmpi sge, %6, %15 : vector<2x256xi32>
    %c1_i32_4 = arith.constant 1 : i32
    %17 = tpu.dynamic_rotate %3 by %c1_i32_4 dim 1 : vector<2x256xf32>, i32 -> vector<2x256xf32>
    %cst_5 = arith.constant 0.000000e+00 : f32
    %18 = vector.broadcast %cst_5 : f32 to vector<2x256xf32>
    %19 = arith.select %16, %17, %18 : vector<2x256xi1>, vector<2x256xf32>
    %20 = arith.addf %14, %19 : vector<2x256xf32>
    %c15_i32_6 = arith.constant 15 : i32
    %21 = vector.broadcast %c15_i32_6 : i32 to vector<2x256xi32>
    %22 = arith.cmpi slt, %8, %21 : vector<2x256xi32>
    %c240_i32 = arith.constant 240 : i32
    %23 = tpu.dynamic_rotate %20 by %c240_i32 dim 1 : vector<2x256xf32>, i32 -> vector<2x256xf32>
    %cst_7 = arith.constant 0.000000e+00 : f32
    %24 = vector.broadcast %cst_7 : f32 to vector<2x256xf32>
    %25 = arith.select %22, %23, %24 : vector<2x256xi1>, vector<2x256xf32>
    %26 = arith.addf %20, %25 : vector<2x256xf32>
    %c1_i32_8 = arith.constant 1 : i32
    %27 = vector.broadcast %c1_i32_8 : i32 to vector<2x256xi32>
    %28 = arith.cmpi sge, %8, %27 : vector<2x256xi32>
    %c16_i32 = arith.constant 16 : i32
    %29 = tpu.dynamic_rotate %20 by %c16_i32 dim 1 : vector<2x256xf32>, i32 -> vector<2x256xf32>
    %cst_9 = arith.constant 0.000000e+00 : f32
    %30 = vector.broadcast %cst_9 : f32 to vector<2x256xf32>
    %31 = arith.select %28, %29, %30 : vector<2x256xi1>, vector<2x256xf32>
    %32 = arith.addf %26, %31 : vector<2x256xf32>
    %cst_10 = arith.constant 9.000000e+00 : f32
    %33 = vector.broadcast %cst_10 : f32 to vector<2x256xf32>
    %34 = arith.mulf %33, %3 : vector<2x256xf32>
    %35 = arith.subf %32, %34 : vector<2x256xf32>
    %cst_11 = arith.constant 0.000000e+00 : f32
    %36 = vector.broadcast %cst_11 : f32 to vector<2x256xf32>
    %37 = arith.cmpf one, %35, %36 : vector<2x256xf32>
    %38 = arith.extui %37 : vector<2x256xi1> to vector<2x256xi32>
    %39 = arith.sitofp %38 : vector<2x256xi32> to vector<2x256xf32>
    %40 = arith.mulf %0, %39 : vector<2x256xf32>
    %cst_12 = arith.constant dense<0.000000e+00> : vector<2xf32>
    %41 = vector.multi_reduction <add>, %40, %cst_12 [1] : vector<2x256xf32> to vector<2xf32>
    %42 = vector.shape_cast %41 : vector<2xf32> to vector<2x1xf32>
    %43 = arith.mulf %0, %0 : vector<2x256xf32>
    %44 = arith.addf %43, %39 : vector<2x256xf32>
    %cst_13 = arith.constant dense<0.000000e+00> : vector<2xf32>
    %45 = vector.multi_reduction <add>, %44, %cst_13 [1] : vector<2x256xf32> to vector<2xf32>
    %46 = vector.shape_cast %45 : vector<2xf32> to vector<2x1xf32>
    %cst_14 = arith.constant 2.000000e+00 : f32
    %47 = vector.broadcast %cst_14 : f32 to vector<2x1xf32>
    %48 = arith.mulf %47, %42 : vector<2x1xf32>
    %cst_15 = arith.constant 1.000000e+00 : f32
    %49 = vector.broadcast %cst_15 : f32 to vector<2x1xf32>
    %50 = arith.addf %48, %49 : vector<2x1xf32>
    %cst_16 = arith.constant 1.000000e+00 : f32
    %51 = vector.broadcast %cst_16 : f32 to vector<2x1xf32>
    %52 = arith.addf %46, %51 : vector<2x1xf32>
    %53 = arith.divf %50, %52 : vector<2x1xf32>
    %cst_17 = arith.constant 1.000000e+00 : f32
    %54 = vector.broadcast %cst_17 : f32 to vector<2x1xf32>
    %55 = arith.subf %54, %53 : vector<2x1xf32>
    %c0_18 = arith.constant 0 : index
    %c0_19 = arith.constant 0 : index
    %56 = vector.load %arg3[%c0_18, %c0_19] : memref<2x1xf32, #tpu.memory_space<vmem>>, vector<2x1xf32>
    tpu.vector_store %arg3[%c0_18, %c0_19], %55 {strides = array<i32>} : memref<2x1xf32, #tpu.memory_space<vmem>>, vector<2x1xf32>,
    return
  }
  func.func @transform_0(%arg0: i32) -> (i32, i32) {
    %c0_i32 = arith.constant 0 : i32
    %c0_i32_0 = arith.constant 0 : i32
    return %arg0, %c0_i32 : i32, i32
  }
  func.func @transform_1(%arg0: i32) -> (i32, i32) {
    %c0_i32 = arith.constant 0 : i32
    %c0_i32_0 = arith.constant 0 : i32
    return %arg0, %c0_i32 : i32, i32
  }
  func.func @transform_2(%arg0: i32) -> (i32, i32) {
    %c0_i32 = arith.constant 0 : i32
    %c0_i32_0 = arith.constant 0 : i32
    return %arg0, %c0_i32 : i32, i32
  }
}

</mosaic_0001>

<llo_original>
// kernel: tpu_custom_call.1
$region0: #{tpu_custom_call.1}
  #allocation0 [shape = 'u32[]', space=smem, size = 0x4, offset = 0x4, fixed_abs, tag = 'smem constant byte address 0x4 - core index']
  #allocation1 [shape = 'u32[72,128]{1,0:T(1,128)}', space=vmem, size = 0x9000, scoped, tag = 'internal scratch']
  %s0 = inlined_call_operand.hbm [shape: f32[2,256], index: 0, kind: input, shape index: {}]
  %s1 = inlined_call_operand.hbm [shape: s8[2,256], index: 1, kind: input, shape index: {}]
  %s2 = inlined_call_operand.vmem [shape: f32[2,1], index: 2, kind: output, shape index: {}]
  %s3 = sld [smem:[#allocation0]]
  $region26: #{tpu_custom_call.1} parent=0
    _
  %s5 = ssub.s32 1, %s3
  %s6 = scalar_select 0, %s5, %s3
  $region1: #{tpu_custom_call.1} parent=0
    #allocation2 [shape = 'u8[2048]{0}', space=vmem, size = 0x800, scoped, tag = 'input window, operand 0, single buffered']
    #allocation3 [shape = 's32[1]{0}', space=sflag, size = 0x4, scoped, tag = 'scoped memory for tpu_custom_call.1']
    #allocation4 [shape = 'u8[1024]{0}', space=vmem, size = 0x400, scoped, tag = 'input window, operand 1, single buffered']
    #allocation5 [shape = 's32[1]{0}', space=sflag, size = 0x4, scoped, tag = 'scoped memory for tpu_custom_call.1']
    %7 = vsyncpa [#allocation3], 0
    %8 = vsyncpa [#allocation5], 0
    // Predicated region
    $region2: #{tpu_custom_call.1} parent=1 // pred_check
      _
    $region3: #{tpu_custom_call.1} parent=1 // pred_check_branch
      %10 = sbr.rel (0) target = $region5
    $region4: #{tpu_custom_call.1} parent=1 // pred_region
      %12 = vsyncadd [#allocation3], 0
      %s14 = sshll.u32 %s0, 4
      %s15 = int_to_ptr.hbm [resolvable:$true] %s14
      %s16 = sshll.u32 [#allocation2], 4
      %s17 = int_to_ptr.vmem [resolvable:$true] %s16
      %19 = dma.hbm_to_vmem [thread:$0]  %s15, 64, %s17, [#allocation3]
    $region5: #{tpu_custom_call.1} parent=1 // pred_fallthru
      _
    // Predicated region
    $region6: #{tpu_custom_call.1} parent=1 // pred_check
      _
    $region7: #{tpu_custom_call.1} parent=1 // pred_check_branch
      %21 = sbr.rel (0) target = $region9
    $region8: #{tpu_custom_call.1} parent=1 // pred_region
      %23 = vsyncadd [#allocation5], 0
      %s25 = sshll.u32 %s1, 4
      %s26 = int_to_ptr.hbm [resolvable:$true] %s25
      %s27 = sshll.u32 [#allocation4], 4
      %s28 = int_to_ptr.vmem [resolvable:$true] %s27
      %30 = dma.hbm_to_vmem [thread:$0]  %s26, 32, %s28, [#allocation5]
    $region9: #{tpu_custom_call.1} parent=1 // pred_fallthru
      _
    // Predicated region
    $region10: #{tpu_custom_call.1} parent=1 // pred_check
      _
    $region11: #{tpu_custom_call.1} parent=1 // pred_check_branch
      %32 = sbr.rel (0) target = $region13
    $region12: #{tpu_custom_call.1} parent=1 // pred_region
      %34 = dma.done [#allocation3], 64
    $region13: #{tpu_custom_call.1} parent=1 // pred_fallthru
      _
    // Predicated region
    $region14: #{tpu_custom_call.1} parent=1 // pred_check
      _
    $region15: #{tpu_custom_call.1} parent=1 // pred_check_branch
      %36 = sbr.rel (0) target = $region17
    $region16: #{tpu_custom_call.1} parent=1 // pred_region
      %38 = dma.done [#allocation5], 32
    $region17: #{tpu_custom_call.1} parent=1 // pred_fallthru
      _
    %v39 = vld [vmem:[#allocation2] sm:$0xf]
    %v40 = vld [vmem:[#allocation4] sm:$0x3]
    %v41 = vunpack.c.0.s8 %v40
    %v42 = vcvt.s32.f32 %v41
    %v43 = vlaneseq
    %v44 = vand.u32 %v43, 127
    %v45 = vadd.s32 %v44, 128
    %v46 = vand.u32 %v44, 15
    %v47 = vand.u32 %v45, 15
    %v48 = vshra.s32 %v44, 4
    %v49 = vshra.s32 %v45, 4
    %vm50 = vcmp.lt.s32.totalorder %v46, 15
    %vm51 = vcmp.lt.s32.totalorder %v47, 15
    %53 = vst [vmem:[#allocation1] ss:$2 sm:$0xff] %v42
    %v54 = vld.sshfl [vmem:[#allocation1] sm:$0xff pattern:$0x75316420]
    %v55 = vld.sshfl [vmem:[#allocation1 + $0x8] sm:$0xff pattern:$0x75316420]
    %58 = vrot.lane.b32.xlu0 %v54, 127
    %v59 = vpop.permute.xlu0 %58
    %60 = vrot.lane.b32.xlu0 %v55, 127
    %v61 = vpop.permute.xlu0 %60
    %vm62 = vcmp.lt.s32.totalorder %v44, 127
    %v63 = vsel %vm62, %v59, %v61
    %v64 = vsel %vm62, %v61, %v59
    %v65 = vsel %vm50, %v63, 0.0
    %v66 = vsel %vm51, %v64, 0.0
    %v69 = vrot.slane %v66, 4
    %vm70 = vcmask 1043456
    %v71 = vsel %vm70, %v65, %v69
    %v73 = vadd.f32 %v42, %v71
    %vm74 = vcmp.ge.s32.totalorder %v46, 1
    %vm75 = vcmp.ge.s32.totalorder %v47, 1
    %76 = vst [vmem:[#allocation1] ss:$2 sm:$0xff] %v42
    %v77 = vld.sshfl [vmem:[#allocation1] sm:$0xff pattern:$0x75316420]
    %v78 = vld.sshfl [vmem:[#allocation1 + $0x8] sm:$0xff pattern:$0x75316420]
    %81 = vrot.lane.b32.xlu0 %v77, 1
    %v82 = vpop.permute.xlu0 %81
    %83 = vrot.lane.b32.xlu0 %v78, 1
    %v84 = vpop.permute.xlu0 %83
    %vm85 = vcmp.lt.s32.totalorder %v44, 1
    %v86 = vsel %vm85, %v82, %v84
    %v87 = vsel %vm85, %v84, %v82
    %v88 = vsel %vm74, %v87, 0.0
    %v89 = vsel %vm75, %v86, 0.0
    %v92 = vrot.slane %v89, 4
    %v93 = vsel %vm70, %v88, %v92
    %v95 = vadd.f32 %v73, %v93
    %vm96 = vcmp.lt.s32.totalorder %v48, 15
    %vm97 = vcmp.lt.s32.totalorder %v49, 15
    %99 = vst [vmem:[#allocation1] ss:$2 sm:$0xff] %v95
    %v100 = vld.sshfl [vmem:[#allocation1] sm:$0xff pattern:$0x75316420]
    %v101 = vld.sshfl [vmem:[#allocation1 + $0x8] sm:$0xff pattern:$0x75316420]
    %104 = vrot.lane.b32.xlu0 %v100, 112
    %v105 = vpop.permute.xlu0 %104
    %106 = vrot.lane.b32.xlu0 %v101, 112
    %v107 = vpop.permute.xlu0 %106
    %vm108 = vcmp.lt.s32.totalorder %v44, 112
    %v109 = vsel %vm108, %v105, %v107
    %v110 = vsel %vm108, %v107, %v105
    %v111 = vsel %vm96, %v109, 0.0
    %v112 = vsel %vm97, %v110, 0.0
    %v115 = vrot.slane %v112, 4
    %v116 = vsel %vm70, %v111, %v115
    %v118 = vadd.f32 %v95, %v116
    %vm119 = vcmp.ge.s32.totalorder %v48, 1
    %vm120 = vcmp.ge.s32.totalorder %v49, 1
    %121 = vst [vmem:[#allocation1] ss:$2 sm:$0xff] %v95
    %v122 = vld.sshfl [vmem:[#allocation1] sm:$0xff pattern:$0x75316420]
    %v123 = vld.sshfl [vmem:[#allocation1 + $0x8] sm:$0xff pattern:$0x75316420]
    %126 = vrot.lane.b32.xlu0 %v122, 16
    %v127 = vpop.permute.xlu0 %126
    %128 = vrot.lane.b32.xlu0 %v123, 16
    %v129 = vpop.permute.xlu0 %128
    %vm130 = vcmp.lt.s32.totalorder %v44, 16
    %v131 = vsel %vm130, %v127, %v129
    %v132 = vsel %vm130, %v129, %v127
    %v133 = vsel %vm119, %v132, 0.0
    %v134 = vsel %vm120, %v131, 0.0
    %v137 = vrot.slane %v134, 4
    %v138 = vsel %vm70, %v133, %v137
    %v140 = vadd.f32 %v118, %v138
    %v141 = vmul.f32 %v42, 9.0
    %v142 = vsub.f32 %v140, %v141
    %vm143 = vcmp.ne.f32.partialorder %v142, 0.0
    %v144 = vsel %vm143, 1, 0
    %v145 = vcvt.s32.f32 %v144
    %v147 = vrot.slane %v145, 2
    %vm148 = vcmask 1041408
    %v149 = vsel %vm148, %v145, %v147
    %v151 = vmul.f32 %v39, %v149
    %153 = vst [vmem:[#allocation1] ss:$4 sm:$0xff] %v151
    %v154 = vld.sshfl [vmem:[#allocation1] sm:$0xff pattern:$0x73625140]
    %v155 = vld.sshfl [vmem:[#allocation1 + $0x8] sm:$0xff pattern:$0x73625140]
    %v158 = vsel %vm148, %v154, 0.0
    %v159 = vsel %vm148, %v155, 0.0
    %v160 = vadd.f32 %v158, %v159
    %161 = vadd.xlane.f32.xlu0 %v160
    %v162 = vpop.xlane.xlu0 %161
    %v163 = vmul.f32 %v39, %v39
    %v164 = vadd.f32 %v163, %v149
    %166 = vst [vmem:[#allocation1] ss:$4 sm:$0xff] %v164
    %v167 = vld.sshfl [vmem:[#allocation1] sm:$0xff pattern:$0x73625140]
    %v168 = vld.sshfl [vmem:[#allocation1 + $0x8] sm:$0xff pattern:$0x73625140]
    %v171 = vsel %vm148, %v167, 0.0
    %v172 = vsel %vm148, %v168, 0.0
    %v173 = vadd.f32 %v171, %v172
    %174 = vadd.xlane.f32.xlu0 %v173
    %v175 = vpop.xlane.xlu0 %174
    %v176 = vmul.f32 %v162, 2.0
    %v177 = vadd.f32 %v176, 1.0
    %v178 = vadd.f32 %v175, 1.0
    %v179 = vrcp.pop %v178
    %v180 = vmul.f32 %v178, %v179
    %v181 = vsub.f32 1.0, %v180
    %v182 = vmul.f32 %v179, %v181
    %v183 = vadd.f32 %v179, %v182
    %vm184 = vweird.f32 %v178
    %vm185 = vweird.f32 %v179
    %vm186 = vmor %vm184, %vm185
    %v187 = vsel %vm186, %v179, %v183
    %v188 = vand.u32 2147483647, %v178
    %vm189 = vcmp.eq.f32.partialorder %v188, 8.507059e+37
    %v190 = vand.u32 %v178, 2147483648
    %v191 = vor.u32 1.1754944e-38, %v190
    %v192 = vsel %vm189, %v191, %v187
    %v193 = vmul.f32 %v177, %v192
    %v194 = vsub.f32 1.0, %v193
    %vm195 = vcmask 1024
    %196 = vst.msk [vmem:[%s2] sm:$0x3] %vm195, %v194
    // Predicated region
    $region18: #{tpu_custom_call.1} parent=1 // pred_check
      _
    $region19: #{tpu_custom_call.1} parent=1 // pred_check_branch
      %198 = sbr.rel (0) target = $region21
    $region20: #{tpu_custom_call.1} parent=1 // pred_region
      _
    $region21: #{tpu_custom_call.1} parent=1 // pred_fallthru
      _
    // Predicated region
    $region22: #{tpu_custom_call.1} parent=1 // pred_check
      _
    $region23: #{tpu_custom_call.1} parent=1 // pred_check_branch
      %200 = sbr.rel (0) target = $region25
    $region24: #{tpu_custom_call.1} parent=1 // pred_region
      _
    $region25: #{tpu_custom_call.1} parent=1 // pred_fallthru
      _
    %201 = vsyncpa [#allocation3], 1
    %202 = vsyncpa [#allocation5], 1

</llo_original>
